<compile_context>
chip_gen: v7x
topology: tpu7x:2x2x1
jax: 0.10.0
libtpu: 0.0.40
codegen_flags: <defaults>
</compile_context>

<pallas_src>
import functools

import jax
import jax.numpy as jnp
from jax.experimental import pallas as pl
from jax.experimental.pallas import tpu as pltpu


def _round_up(x, m):
    return ((x + m - 1) // m) * m


def _vmem_capacity_bytes():
    """Physical VMEM of the local TPU generation (conservative fallback)."""
    try:
        cap = int(pltpu.get_tpu_info().vmem_capacity_bytes)
        if cap > 0:
            return cap
    except Exception:
        pass
    return 64 * 1024 * 1024  # assume smallest (v7x-class) VMEM if unknown


# ---------------------------------------------------------------------------
# Kernels
# ---------------------------------------------------------------------------
def _res_head_single_kernel(x_ref, w_ref, b_ref, o_ref, *, inv_hw):
    """Whole spatial extent in one tile: no accumulator scratch needed."""
    # x_ref: (tN, C, HW)   w_ref: (C, Kp)   b_ref: (1, Kp)   o_ref: (tN, Kp)
    pooled = jnp.sum(x_ref[...], axis=-1, dtype=jnp.float32) * inv_hw
    w = w_ref[...]
    if w.dtype == jnp.bfloat16:          # bf16 MXU path
        pooled = pooled.astype(jnp.bfloat16)
    y = jnp.dot(pooled, w, preferred_element_type=jnp.float32)
    o_ref[...] = (y + b_ref[...].astype(jnp.float32)).astype(o_ref.dtype)


def _res_head_multi_kernel(x_ref, w_ref, b_ref, o_ref, acc_ref, *,
                           inv_hw, hw_total, t_hw, needs_mask):
    """Spatial reduction tiled over grid axis 1; f32 accumulator in VMEM."""
    k = pl.program_id(1)

    @pl.when(k == 0)
    def _init():
        acc_ref[...] = jnp.zeros_like(acc_ref)

    x = x_ref[...]
    if needs_mask:  # static: HW % t_hw != 0 -> mask the out-of-bounds tail
        valid = hw_total - k * t_hw
        idx = jax.lax.broadcasted_iota(jnp.int32, x.shape, x.ndim - 1)
        x = jnp.where(idx < valid, x, 0)

    # Spatial partial sum accumulated directly in f32 (no full-tile cast).
    acc_ref[...] += jnp.sum(x, axis=-1, dtype=jnp.float32)

    @pl.when(k == pl.num_programs(1) - 1)
    def _finalize():
        pooled = acc_ref[...] * inv_hw          # mean = sum * (1/HW), once
        w = w_ref[...]
        if w.dtype == jnp.bfloat16:
            pooled = pooled.astype(jnp.bfloat16)
        y = jnp.dot(pooled, w, preferred_element_type=jnp.float32)
        o_ref[...] = (y + b_ref[...].astype(jnp.float32)).astype(o_ref.dtype)


# ---------------------------------------------------------------------------
# Wrapper
# ---------------------------------------------------------------------------
def res_head_forward(x_nchw, weight, bias, *, out_dtype=None, max_t_hw=None):
    """ResHead forward.

    x_nchw: (N, C, H, W); weight: (num_classes, C) [PyTorch Linear layout];
    bias: (num_classes,).  Returns (N, num_classes).
    """
    N, C, H, W = x_nchw.shape
    K = weight.shape[0]
    HW = H * W
    out_dtype = out_dtype if out_dtype is not None else x_nchw.dtype

    x_itemsize = jnp.dtype(x_nchw.dtype).itemsize
    w_itemsize = jnp.dtype(weight.dtype).itemsize
    o_itemsize = jnp.dtype(out_dtype).itemsize

    # ---- per-generation budgets -------------------------------------------
    vmem_cap = _vmem_capacity_bytes()
    if vmem_cap >= 96 * 1024 * 1024:      # v5e / v6e: 128 MiB VMEM, 1 TC
        vmem_limit = 100 * 1024 * 1024
        x_budget = 20 * 1024 * 1024       # bytes per single x buffer
        two_tensorcores = False
    else:                                  # v7x-class: 64 MiB VMEM, 2 TCs
        vmem_limit = 48 * 1024 * 1024
        x_budget = 7 * 1024 * 1024
        two_tensorcores = True

    k_p = _round_up(K, 128)               # lane-dense output / weight columns

    # ---- spatial (reduction) tile: budget binds on C * t_hw ---------------
    if 8 * C * HW * x_itemsize <= x_budget:
        t_hw = HW                          # whole spatial extent, one step
    elif HW >= 128:
        t_hw = (x_budget // (8 * C * x_itemsize)) // 128 * 128
        t_hw = max(128, min(t_hw, (HW // 128) * 128))
    else:
        t_hw = HW                          # cannot split below the lane dim
    if max_t_hw is not None:
        t_hw = min(t_hw, max_t_hw)
    t_hw = min(t_hw, HW)

    # ---- batch tile ---------------------------------------------------------
    t_n = x_budget // max(1, C * t_hw * x_itemsize)
    t_n = max(8, (t_n // 8) * 8)
    if t_n >= 256:                         # MXU-friendly M on v6e/v7x
        t_n = (t_n // 256) * 256
    if two_tensorcores and N >= 16:
        # Keep >= 2 batch tiles so the "parallel" axis shards over both TCs.
        t_n = min(t_n, _round_up(pl.cdiv(N, 2), 8))
    if N < 8:
        t_n = N                            # block == full batch dim
    else:
        t_n = max(8, min(t_n, (N // 8) * 8))

    # ---- verify double-buffered working set fits the VMEM limit -------------
    def _vmem_usage(tn, thw):
        steps = -(-HW // thw)
        x_buf = tn * _round_up(C, 8) * _round_up(thw, 128) * x_itemsize
        w_buf = _round_up(C, 8) * k_p * w_itemsize
        b_buf = 8 * k_p * w_itemsize
        o_buf = _round_up(tn, 8) * k_p * o_itemsize
        acc = (_round_up(tn, 8) * _round_up(C, 128) * 4) if steps > 1 else 0
        return 2 * (x_buf + w_buf + b_buf + o_buf) + acc

    headroom = 2 * 1024 * 1024
    while _vmem_usage(t_n, t_hw) > vmem_limit - headroom and t_n > 8:
        t_n = max(8, ((t_n // 2) // 8) * 8)
    while _vmem_usage(t_n, t_hw) > vmem_limit - headroom and t_hw > 128:
        t_hw = max(128, ((t_hw // 2) // 128) * 128)

    hw_steps = pl.cdiv(HW, t_hw)
    n_steps = pl.cdiv(N, t_n)
    needs_mask = (HW % t_hw) != 0
    inv_hw = float(1.0 / HW)

    # ---- operands -----------------------------------------------------------
    # No pad of x: the reshape of contiguous NCHW to (N, C, HW) is free.
    x = x_nchw.reshape(N, C, HW)
    # TODO(synk): if the producer can emit NHWC / (N, HW, C) for free, use an
    # (t_n, t_hw, C) block so the lane dim is C (dense for HW=49 heads).
    w_t = jnp.pad(weight.T, ((0, 0), (0, k_p - K)))        # (C, Kp), tiny
    b = jnp.pad(bias, (0, k_p - K)).reshape(1, k_p)        # (1, Kp), tiny

    cost = pl.CostEstimate(
        flops=N * C * HW + 2 * N * C * K,   # pooling adds + FC matmul
        transcendentals=0,
        bytes_accessed=(N * C * HW * x_itemsize
                        + (C * K + K) * w_itemsize
                        + N * K * o_itemsize),
    )

    if hw_steps == 1:
        kernel = functools.partial(_res_head_single_kernel, inv_hw=inv_hw)
        grid = (n_steps,)
        in_specs = [
            pl.BlockSpec((t_n, C, t_hw), lambda i: (i, 0, 0)),
            pl.BlockSpec((C, k_p), lambda i: (0, 0)),
            pl.BlockSpec((1, k_p), lambda i: (0, 0)),
        ]
        out_specs = pl.BlockSpec((t_n, k_p), lambda i: (i, 0))
        scratch_shapes = []
        dims = ("parallel",)
    else:
        kernel = functools.partial(_res_head_multi_kernel, inv_hw=inv_hw,
                                   hw_total=HW, t_hw=t_hw,
                                   needs_mask=needs_mask)
        grid = (n_steps, hw_steps)
        in_specs = [
            # x streams tile-by-tile over (batch, spatial).
            pl.BlockSpec((t_n, C, t_hw), lambda i, k: (i, 0, k)),
            # Weight & bias: constant index map -> resident across reduction.
            # TODO(synk): pipeline_mode=pl.Buffered(1) here would reclaim the
            # redundant second buffer of these constant blocks on v7x.
            pl.BlockSpec((C, k_p), lambda i, k: (0, 0)),
            pl.BlockSpec((1, k_p), lambda i, k: (0, 0)),
        ]
        out_specs = pl.BlockSpec((t_n, k_p), lambda i, k: (i, 0))
        scratch_shapes = [pltpu.VMEM((t_n, C), jnp.float32)]
        dims = ("parallel", "arbitrary")

    out = pl.pallas_call(
        kernel,
        out_shape=jax.ShapeDtypeStruct((N, k_p), out_dtype),
        grid_spec=pltpu.PrefetchScalarGridSpec(
            num_scalar_prefetch=0,
            grid=grid,
            in_specs=in_specs,
            out_specs=out_specs,
            scratch_shapes=scratch_shapes,
        ),
        compiler_params=pltpu.CompilerParams(
            dimension_semantics=dims,
            vmem_limit_bytes=vmem_limit,
        ),
        cost_estimate=cost,
    )(x, w_t, b)

    return out[:, :K]


if __name__ == "__main__":
    key = jax.random.PRNGKey(0)
    kx, kw, kb, kx2, kw2, kb2 = jax.random.split(key, 6)

    # --- Case 1: small shapes consistent with the module (single-step path) -
    N, C, H, W, K = 2, 4, 16, 16, 8
    x = jax.random.normal(kx, (N, C, H, W), dtype=jnp.float32)
    weight = jax.random.normal(kw, (K, C), dtype=jnp.float32) * 0.1
    bias = jax.random.normal(kb, (K,), dtype=jnp.float32) * 0.1

    out = jax.block_until_ready(res_head_forward(x, weight, bias))
    ref = jnp.mean(x, axis=(2, 3)) @ weight.T + bias
    assert out.shape == (N, K)
    assert jnp.allclose(out, ref, atol=1e-5, rtol=1e-5)

    # --- Case 2: exercise the tiled-spatial accumulator + remainder mask ----
    N2, C2, H2, W2, K2 = 3, 8, 15, 15, 10
    x2 = jax.random.normal(kx2, (N2, C2, H2, W2), dtype=jnp.float32)
    w2 = jax.random.normal(kw2, (K2, C2), dtype=jnp.float32) * 0.1
    b2 = jax.random.normal(kb2, (K2,), dtype=jnp.float32) * 0.1

    out2 = jax.block_until_ready(res_head_forward(x2, w2, b2, max_t_hw=128))
    ref2 = jnp.mean(x2, axis=(2, 3)) @ w2.T + b2
    assert out2.shape == (N2, K2)
    assert jnp.allclose(out2, ref2, atol=1e-5, rtol=1e-5)

    # --- Case 3: bf16 weights (mixed-precision MXU path, looser tolerance) --
    xb = x.astype(jnp.bfloat16)
    wb = weight.astype(jnp.bfloat16)
    bb = bias.astype(jnp.bfloat16)
    out3 = jax.block_until_ready(
        res_head_forward(xb, wb, bb, out_dtype=jnp.float32))
    ref3 = (jnp.mean(xb.astype(jnp.float32), axis=(2, 3))
            @ wb.astype(jnp.float32).T + bb.astype(jnp.float32))
    assert out3.shape == (N, K)
    assert jnp.allclose(out3, ref3, atol=2e-2, rtol=2e-2)

    print("KERNEL_OK")
</pallas_src>

<mosaic_0001>
module attributes {stable_mosaic.version = 11 : i64} {
  func.func @_res_head_single_kernel(%arg0: i32, %arg1: memref<2x4x256xf32, #tpu.memory_space<vmem>>, %arg2: memref<4x128xf32, #tpu.memory_space<vmem>>, %arg3: memref<1x128xf32, #tpu.memory_space<vmem>>, %arg4: memref<2x128xf32, #tpu.memory_space<vmem>>) attributes {dimension_semantics = [#tpu.dimension_semantics<parallel>], iteration_bounds = array<i64: 1>, scalar_prefetch = 0 : i64, scratch_operands = 0 : i64, tpu.core_type = #tpu.core_type<tc>, window_params = [{transform_indices = @transform_0, window_bounds = array<i64: 2, 4, 256>}, {pipeline_mode = #tpu.pipeline_mode<synchronous>, transform_indices = @transform_1, window_bounds = array<i64: 4, 128>}, {pipeline_mode = #tpu.pipeline_mode<synchronous>, transform_indices = @transform_2, window_bounds = array<i64: 1, 128>}, {transform_indices = @transform_3, window_bounds = array<i64: 2, 128>}]} {
    %c0 = arith.constant 0 : index
    %c0_0 = arith.constant 0 : index
    %c0_1 = arith.constant 0 : index
    %0 = vector.load %arg1[%c0, %c0_0, %c0_1] : memref<2x4x256xf32, #tpu.memory_space<vmem>>, vector<2x4x256xf32>
    %cst = arith.constant dense<0.000000e+00> : vector<2x4xf32>
    %1 = vector.multi_reduction <add>, %0, %cst [2] : vector<2x4x256xf32> to vector<2x4xf32>
    %cst_2 = arith.constant 3.906250e-03 : f32
    %2 = vector.broadcast %cst_2 : f32 to vector<2x4xf32>
    %3 = arith.mulf %1, %2 : vector<2x4xf32>
    %c0_3 = arith.constant 0 : index
    %c0_4 = arith.constant 0 : index
    %4 = vector.load %arg2[%c0_3, %c0_4] : memref<4x128xf32, #tpu.memory_space<vmem>>, vector<4x128xf32>
    %cst_5 = arith.constant dense<0.000000e+00> : vector<2x128xf32>
    %5 = tpu.matmul %3, %4, %cst_5 {dimension_numbers = #tpu.dot_dimension_numbers<[1], [0], [0], [1], [0, 0, 1, 1], [], []>} : vector<2x4xf32>, vector<4x128xf32>, vector<2x128xf32> -> vector<2x128xf32>
    %c0_6 = arith.constant 0 : index
    %c0_7 = arith.constant 0 : index
    %6 = vector.load %arg3[%c0_6, %c0_7] : memref<1x128xf32, #tpu.memory_space<vmem>>, vector<1x128xf32>
    %7 = vector.broadcast %6 : vector<1x128xf32> to vector<2x128xf32>
    %8 = arith.addf %5, %7 : vector<2x128xf32>
    %c0_8 = arith.constant 0 : index
    %c0_9 = arith.constant 0 : index
    %9 = vector.load %arg4[%c0_8, %c0_9] : memref<2x128xf32, #tpu.memory_space<vmem>>, vector<2x128xf32>
    tpu.vector_store %arg4[%c0_8, %c0_9], %8 {strides = array<i32>} : memref<2x128xf32, #tpu.memory_space<vmem>>, vector<2x128xf32>,
    return
  }
  func.func @transform_0(%arg0: i32) -> (i32, i32, i32) {
    %c0_i32 = arith.constant 0 : i32
    %c0_i32_0 = arith.constant 0 : i32
    %c0_i32_1 = arith.constant 0 : i32
    return %arg0, %c0_i32, %c0_i32_0 : i32, i32, i32
  }
  func.func @transform_1(%arg0: i32) -> (i32, i32) {
    %c0_i32 = arith.constant 0 : i32
    %c0_i32_0 = arith.constant 0 : i32
    %c0_i32_1 = arith.constant 0 : i32
    return %c0_i32, %c0_i32_0 : i32, i32
  }
  func.func @transform_2(%arg0: i32) -> (i32, i32) {
    %c0_i32 = arith.constant 0 : i32
    %c0_i32_0 = arith.constant 0 : i32
    %c0_i32_1 = arith.constant 0 : i32
    return %c0_i32, %c0_i32_0 : i32, i32
  }
  func.func @transform_3(%arg0: i32) -> (i32, i32) {
    %c0_i32 = arith.constant 0 : i32
    %c0_i32_0 = arith.constant 0 : i32
    return %arg0, %c0_i32 : i32, i32
  }
}

</mosaic_0001>

<llo_original>
// kernel: tpu_custom_call.1
$region0: #{tpu_custom_call.1}
  #allocation0 [shape = 'u32[]', space=smem, size = 0x4, offset = 0x4, fixed_abs, tag = 'smem constant byte address 0x4 - core index']
  #allocation1 [shape = 'u32[144,128]{1,0:T(1,128)}', space=vmem, size = 0x12000, scoped, tag = 'internal scratch']
  %s0 = inlined_call_operand.hbm [shape: f32[2,4,256], index: 0, kind: input, shape index: {}]
  %s1 = inlined_call_operand.hbm [shape: f32[4,128], index: 1, kind: input, shape index: {}]
  %s2 = inlined_call_operand.vmem [shape: f32[1,128], index: 2, kind: input, shape index: {}]
  %s3 = inlined_call_operand.hbm [shape: f32[2,128], index: 3, kind: output, shape index: {}]
  %s4 = sld [smem:[#allocation0]]
  $region30: #{tpu_custom_call.1} parent=0
    _
  %s6 = ssub.s32 1, %s4
  %s7 = scalar_select 0, %s6, %s4
  $region1: #{tpu_custom_call.1} parent=0
    #allocation2 [shape = 'u8[8192]{0}', space=vmem, size = 0x2000, scoped, tag = 'input window, operand 0, single buffered']
    #allocation3 [shape = 's32[1]{0}', space=sflag, size = 0x4, scoped, tag = 'scoped memory for tpu_custom_call.1']
    #allocation4 [shape = 's32[1]{0}', space=sflag, size = 0x4, scoped, tag = 'scoped memory for tpu_custom_call.1']
    #allocation5 [shape = 'u8[2048]{0}', space=vmem, size = 0x800, scoped, tag = 'input window, operand 1, single buffered']
    #allocation6 [shape = 's32[1]{0}', space=sflag, size = 0x4, scoped, tag = 'scoped memory for tpu_custom_call.1']
    #allocation7 [shape = 'u8[1024]{0}', space=vmem, size = 0x400, scoped, tag = 'output window, operand 0, single buffered']
    %8 = vsyncpa [#allocation3], 0
    %9 = vsyncpa [#allocation6], 0
    %10 = vsyncpa [#allocation4], 0
    // Predicated region
    $region2: #{tpu_custom_call.1} parent=1 // pred_check
      _
    $region3: #{tpu_custom_call.1} parent=1 // pred_check_branch
      %12 = sbr.rel (0) target = $region5
    $region4: #{tpu_custom_call.1} parent=1 // pred_region
      %s14 = ssub.s32 256, 256
      %15 = vsyncadd [#allocation3], %s14
      %s16 = sshll.u32 [#allocation2], 4
      %s17 = int_to_ptr.vmem [resolvable:$true] %s16
      %22 = dma.hbm_to_vmem [thread:$0]  %s0, 256, %s17, [#allocation3], 128, 128, 8
    $region5: #{tpu_custom_call.1} parent=1 // pred_fallthru
      _
    // Predicated region
    $region6: #{tpu_custom_call.1} parent=1 // pred_check
      _
    $region7: #{tpu_custom_call.1} parent=1 // pred_check_branch
      %24 = sbr.rel (0) target = $region9
    $region8: #{tpu_custom_call.1} parent=1 // pred_region
      %s26 = ssub.s32 64, 64
      %27 = vsyncadd [#allocation6], %s26
      %s29 = sshll.u32 [#allocation5], 4
      %s30 = int_to_ptr.vmem [resolvable:$true] %s29
      %32 = dma.hbm_to_vmem [thread:$0]  %s1, 64, %s30, [#allocation6]
    $region9: #{tpu_custom_call.1} parent=1 // pred_fallthru
      _
    // Predicated region
    $region10: #{tpu_custom_call.1} parent=1 // pred_check
      _
    $region11: #{tpu_custom_call.1} parent=1 // pred_check_branch
      %34 = sbr.rel (0) target = $region13
    $region12: #{tpu_custom_call.1} parent=1 // pred_region
      _
    $region13: #{tpu_custom_call.1} parent=1 // pred_fallthru
      _
    // Predicated region
    $region14: #{tpu_custom_call.1} parent=1 // pred_check
      _
    $region15: #{tpu_custom_call.1} parent=1 // pred_check_branch
      %36 = sbr.rel (0) target = $region17
    $region16: #{tpu_custom_call.1} parent=1 // pred_region
      %37 = dma.done [#allocation3], 256
    $region17: #{tpu_custom_call.1} parent=1 // pred_fallthru
      _
    // Predicated region
    $region18: #{tpu_custom_call.1} parent=1 // pred_check
      _
    $region19: #{tpu_custom_call.1} parent=1 // pred_check_branch
      %39 = sbr.rel (0) target = $region21
    $region20: #{tpu_custom_call.1} parent=1 // pred_region
      %40 = dma.done [#allocation6], 64
    $region21: #{tpu_custom_call.1} parent=1 // pred_fallthru
      _
    %v41 = vld [vmem:[#allocation2] sm:$0xff]
    %v42 = vld [vmem:[#allocation2 + $0x8] sm:$0xff]
    %v45 = vcombine.high %v41, %v41
    %v46 = vcombine.high %v42, %v42
    %vm49 = vcmask 1043456
    %v50 = vsel %vm49, %v41, 0.0
    %v51 = vsel %vm49, %v45, 0.0
    %v52 = vadd.f32 %v50, %v51
    %53 = vadd.xlane.f32.xlu0 %v52
    %v54 = vpop.xlane.xlu0 %53
    %v55 = vsel %vm49, %v42, 0.0
    %v56 = vsel %vm49, %v46, 0.0
    %v57 = vadd.f32 %v55, %v56
    %58 = vadd.xlane.f32.xlu0 %v57
    %v59 = vpop.xlane.xlu0 %58
    %v60 = vmul.f32 %v54, 0.00390625
    %v61 = vmul.f32 %v59, 0.00390625
    %v62 = vld [vmem:[#allocation5] sm:$0xf]
    %v63 = vld [vmem:[%s2] sm:$0x1]
    %v65 = vlaneseq
    %v66 = vshrl.u32 %v65, 7
    %v67 = vsub.s32 0, %v66
    %v68 = vrot.slane %v63, %v67
    %v72 = vlaneseq
    %v73 = vand.u32 %v72, 127
    %v74 = vlaneseq
    %v75 = vshrl.u32 %v74, 7
    %v76 = vsub.s32 %v73, %v75
    %v77 = vrot.slane %v60, %v76
    %v78 = vlaneseq
    %v79 = vshrl.u32 %v78, 7
    %v80 = vsub.s32 %v73, %v79
    %v81 = vrot.slane %v61, %v80
    %vm82 = vcmask 1041409
    %v83 = vsel %vm82, %v81, %v77
    %vm84 = vcmask 31744
    %v85 = vsel %vm84, %v83, 0
    %v88 = vsel %vm49, %v62, 0
    %90 = vmatprep.subr.mxu0 0.0
    %91 = vmatpush1.msra.mxu0 %v88
    %92 = vmatprep.subr.mxu0 0.0
    %93 = vmatpush1.msra.mxu0 0.0
    %94 = vmatprep.subr.mxu0 0.0
    %95 = vmatpush1.msra.mxu0 0.0
    %96 = vmatprep.subr.mxu0 0.0
    %97 = vmatpush1.msra.mxu0 0.0
    %98 = vmatprep.subr.mxu0 0.0
    %99 = vmatpush1.msra.mxu0 0.0
    %100 = vmatprep.subr.mxu0 0.0
    %101 = vmatpush1.msra.mxu0 0.0
    %102 = vmatprep.subr.mxu0 0.0
    %103 = vmatpush1.msra.mxu0 0.0
    %104 = vmatprep.subr.mxu0 0.0
    %105 = vmatpush1.msra.mxu0 0.0
    %106 = vmatprep.subr.mxu0 0.0
    %107 = vmatpush1.msra.mxu0 0.0
    %108 = vmatprep.subr.mxu0 0.0
    %109 = vmatpush1.msra.mxu0 0.0
    %110 = vmatprep.subr.mxu0 0.0
    %111 = vmatpush1.msra.mxu0 0.0
    %112 = vmatprep.subr.mxu0 0.0
    %113 = vmatpush1.msra.mxu0 0.0
    %114 = vmatprep.subr.mxu0 0.0
    %115 = vmatpush1.msra.mxu0 0.0
    %116 = vmatprep.subr.mxu0 0.0
    %117 = vmatpush1.msra.mxu0 0.0
    %118 = vmatprep.subr.mxu0 0.0
    %119 = vmatpush1.msra.mxu0 0.0
    %120 = vmatprep.subr.mxu0 0.0
    %121 = vmatpush1.msra.mxu0 0.0
    %122 = vmatprep.subr.mxu0 0.0
    %123 = vmatpush1.msra.mxu0 0.0
    %124 = vmatprep.subr.mxu0 0.0
    %125 = vmatpush1.msra.mxu0 0.0
    %126 = vmatprep.subr.mxu0 0.0
    %127 = vmatpush1.msra.mxu0 0.0
    %128 = vmatprep.subr.mxu0 0.0
    %129 = vmatpush1.msra.mxu0 0.0
    %130 = vmatprep.subr.mxu0 0.0
    %131 = vmatpush1.msra.mxu0 0.0
    %132 = vmatprep.subr.mxu0 0.0
    %133 = vmatpush1.msra.mxu0 0.0
    %134 = vmatprep.subr.mxu0 0.0
    %135 = vmatpush1.msra.mxu0 0.0
    %136 = vmatprep.subr.mxu0 0.0
    %137 = vmatpush1.msra.mxu0 0.0
    %138 = vmatprep.subr.mxu0 0.0
    %139 = vmatpush1.msra.mxu0 0.0
    %140 = vmatprep.subr.mxu0 0.0
    %141 = vmatpush1.msra.mxu0 0.0
    %142 = vmatprep.subr.mxu0 0.0
    %143 = vmatpush1.msra.mxu0 0.0
    %144 = vmatprep.subr.mxu0 0.0
    %145 = vmatpush1.msra.mxu0 0.0
    %146 = vmatprep.subr.mxu0 0.0
    %147 = vmatpush1.msra.mxu0 0.0
    %148 = vmatprep.subr.mxu0 0.0
    %149 = vmatpush1.msra.mxu0 0.0
    %150 = vmatprep.subr.mxu0 0.0
    %151 = vmatpush1.msra.mxu0 0.0
    %152 = vmatprep.subr.mxu0 0.0
    %153 = vmatpush1.msra.mxu0 0.0
    %154 = vmatprep.mubr.f32.mxu0 0.0
    %155 = vmatmul.mubr.f32.gmra.mrb[0].mxu0 %v85
    %v156 = vpop.f32.mrb[0].mxu0
    %v157 = vadd.f32 %v68, %v156
    %v158 = vpop.f32.mrb[0].mxu0
    %159 = vdwg.mxu0
    %160 = vst [vmem:[#allocation7] sm:$0x3] %v157
    // Predicated region
    $region22: #{tpu_custom_call.1} parent=1 // pred_check
      _
    $region23: #{tpu_custom_call.1} parent=1 // pred_check_branch
      %162 = sbr.rel (0) target = $region25
    $region24: #{tpu_custom_call.1} parent=1 // pred_region
      %s164 = ssub.s32 32, 32
      %165 = vsyncadd [#allocation4], %s164
      %s167 = sshll.u32 [#allocation7], 4
      %s168 = int_to_ptr.vmem [resolvable:$true] %s167
      %170 = dma.vmem_to_hbm [thread:$0]  %s168, 32, %s3, [#allocation4]
    $region25: #{tpu_custom_call.1} parent=1 // pred_fallthru
      _
    // Predicated region
    $region26: #{tpu_custom_call.1} parent=1 // pred_check
      _
    $region27: #{tpu_custom_call.1} parent=1 // pred_check_branch
      %172 = sbr.rel (0) target = $region29
    $region28: #{tpu_custom_call.1} parent=1 // pred_region
      %173 = dma.done [#allocation4], 32
    $region29: #{tpu_custom_call.1} parent=1 // pred_fallthru
      _
    %174 = vsyncpa [#allocation3], 1
    %175 = vsyncpa [#allocation6], 1
    %176 = vsyncpa [#allocation4], 1

</llo_original>
